<compile_context>
chip_gen: v6e
topology: v6e:2x2x1
jax: 0.10.0
libtpu: 0.0.40
codegen_flags: <defaults>
</compile_context>

<pallas_src>
import functools

import jax
import jax.numpy as jnp
from jax.experimental import pallas as pl
from jax.experimental.pallas import tpu as pltpu


def _round_up(v, m):
    return ((v + m - 1) // m) * m


def _pad2(m, rows, cols):
    r, c = m.shape
    return jnp.pad(m, ((0, rows - r), (0, cols - c)))


def _pick_tile(n, max_feature_width):
    """Largest tile in {512, 256, 128} that keeps >= 2 row tiles (v7x has two
    TensorCores sharing the "parallel" row axis); 128 for tiny graphs."""
    tile = 128
    for t in (512, 256):
        if n >= 2 * t:
            tile = t
            break
    # Very wide feature streams dominate VMEM; cap the tile so double-buffered
    # windows stay comfortably inside v7x's 64 MiB physical VMEM.
    if max_feature_width >= 2048:
        tile = min(tile, 256)
    return tile


def _vmem_limit_bytes(tm, tk, f_nb, f_self, f_out, acc_cols, has_wl,
                      out_itemsize):
    b = 0
    b += 2 * tm * tk * 2            # A tiles (bf16 counts), double buffered
    b += 2 * tk * f_nb * 2          # neighbor stream (X or hoisted Z), x2 bufs
    b += 2 * tm * f_self * 2        # self stream, double buffered
    if has_wl:
        b += f_self * f_out * 2     # W_l, single buffered (Buffered(1))
    b += f_self * f_out * 2         # W_r, single buffered (Buffered(1))
    b += f_out * 4                  # bias (f32, single buffered)
    b += 2 * tm * 4                 # 1/deg column
    b += tm * acc_cols * 4          # f32 accumulator scratch
    b += 2 * tm * f_out * out_itemsize  # output, double buffered
    # 1.5x headroom for compiler-internal scratch; floor raises v5e's 16 MiB
    # default, cap stays well under v7x's 64 MiB physical VMEM.
    return int(min(max(b * 1.5 + (2 << 20), 16 << 20), 48 << 20))


def build_count_adjacency(edge_index, padded_nodes):
    """Dense raw in-edge counts (bf16) + f32 1/deg column.

    A[i, j] = #edges j->i (exact in bf16 up to 256 duplicates).  Padded /
    isolated rows have an all-zero count row and inv_deg = 1 => mean = 0,
    matching PyG scatter_mean.  Only a single O(N^2) bf16 scatter pass; the
    mean normalization is applied in f32 in the kernel epilogue.
    """
    src = edge_index[0]
    dst = edge_index[1]
    ones = jnp.ones(src.shape, jnp.bfloat16)
    adj = jnp.zeros((padded_nodes, padded_nodes), jnp.bfloat16)
    adj = adj.at[dst, src].add(ones)
    deg = jnp.zeros((padded_nodes,), jnp.float32).at[dst].add(1.0)
    inv_deg = (1.0 / jnp.maximum(deg, 1.0)).reshape(padded_nodes, 1)
    return adj, inv_deg


# ----------------------------------------------------------------------------
# Hoisted projection kernel: Z = X @ W_l, computed once (not once per row tile)
# ----------------------------------------------------------------------------
def _project_kernel(x_ref, w_ref, o_ref):
    o_ref[...] = jnp.dot(x_ref[...], w_ref[...],
                         preferred_element_type=jnp.float32).astype(o_ref.dtype)


def project(x_pad, w, *, tm):
    n_pad, f_in = x_pad.shape
    f_out = w.shape[1]
    return pl.pallas_call(
        _project_kernel,
        out_shape=jax.ShapeDtypeStruct((n_pad, f_out), jnp.bfloat16),
        grid_spec=pltpu.PrefetchScalarGridSpec(
            num_scalar_prefetch=0,
            grid=(n_pad // tm,),
            in_specs=[
                pl.BlockSpec((tm, f_in), lambda i: (i, 0)),
                pl.BlockSpec((f_in, f_out), lambda i: (0, 0)),
            ],
            out_specs=pl.BlockSpec((tm, f_out), lambda i: (i, 0)),
        ),
        compiler_params=pltpu.CompilerParams(
            dimension_semantics=("parallel",),
        ),
    )(x_pad, w)


# ----------------------------------------------------------------------------
# SAGE layer kernel: aggregation over adjacency column tiles + fused epilogue
# ----------------------------------------------------------------------------
def _sage_layer_kernel(*refs, has_wl, apply_relu):
    if has_wl:
        (a_ref, nb_ref, xs_ref, wl_ref, wr_ref, b_ref, inv_ref,
         o_ref, acc_ref) = refs
    else:
        (a_ref, nb_ref, xs_ref, wr_ref, b_ref, inv_ref,
         o_ref, acc_ref) = refs
        wl_ref = None

    k = pl.program_id(1)
    nk = pl.num_programs(1)

    @pl.when(k == 0)
    def _():
        acc_ref[...] = jnp.zeros_like(acc_ref)

    # bf16 x bf16 MXU matmul, f32 accumulation.  A holds raw edge counts; the
    # 1/deg mean scale is applied once, in f32, in the epilogue.
    acc_ref[...] += jnp.dot(a_ref[...], nb_ref[...],
                            preferred_element_type=jnp.float32)

    @pl.when(k == nk - 1)
    def _():
        neighbor = acc_ref[...] * inv_ref[...]            # f32 row scale (mean)
        if wl_ref is not None:
            # agg-first path: project the aggregated features (bf16 x bf16 MXU).
            neighbor = jnp.dot(neighbor.astype(jnp.bfloat16), wl_ref[...],
                               preferred_element_type=jnp.float32)
        self_term = jnp.dot(xs_ref[...], wr_ref[...],
                            preferred_element_type=jnp.float32)
        out = neighbor + self_term + b_ref[...]           # f32 epilogue
        if apply_relu:
            out = jnp.maximum(out, 0.0)
        o_ref[...] = out.astype(o_ref.dtype)


def sage_conv(a_pad, nb_feats, x_self, w_l, w_r, b, inv_deg, *,
              neighbors_projected, apply_relu, tm, tk, out_dtype):
    """One SAGEConv layer as a tiled pallas_call over the padded graph."""
    n_pad = a_pad.shape[0]
    f_nb = nb_feats.shape[1]      # f_out (hoisted Z) or f_in (raw X)
    f_self = x_self.shape[1]      # f_in
    f_out = w_r.shape[1]
    acc_cols = f_nb               # accumulator width == neighbor-stream width
    has_wl = not neighbors_projected

    grid = (n_pad // tm, n_pad // tk)

    in_specs = [
        pl.BlockSpec((tm, tk), lambda i, k: (i, k)),          # A counts (bf16)
        pl.BlockSpec((tk, f_nb), lambda i, k: (k, 0)),        # neighbor stream
        pl.BlockSpec((tm, f_self), lambda i, k: (i, 0)),      # self stream
    ]
    args = [a_pad, nb_feats, x_self]
    if has_wl:
        in_specs.append(pl.BlockSpec((f_self, f_out), lambda i, k: (0, 0),
                                     pipeline_mode=pl.Buffered(1)))  # W_l
        args.append(w_l)
    in_specs += [
        pl.BlockSpec((f_self, f_out), lambda i, k: (0, 0),
                     pipeline_mode=pl.Buffered(1)),            # W_r (invariant)
        pl.BlockSpec((1, f_out), lambda i, k: (0, 0),
                     pipeline_mode=pl.Buffered(1)),            # bias (invariant)
        pl.BlockSpec((tm, 1), lambda i, k: (i, 0)),            # 1/deg column
    ]
    args += [w_r, b, inv_deg]

    vmem_limit = _vmem_limit_bytes(
        tm, tk, f_nb, f_self, f_out, acc_cols, has_wl,
        out_itemsize=jnp.dtype(out_dtype).itemsize)

    kernel = functools.partial(_sage_layer_kernel,
                               has_wl=has_wl, apply_relu=apply_relu)

    return pl.pallas_call(
        kernel,
        out_shape=jax.ShapeDtypeStruct((n_pad, f_out), out_dtype),
        grid_spec=pltpu.PrefetchScalarGridSpec(
            num_scalar_prefetch=0,
            grid=grid,
            in_specs=in_specs,
            out_specs=pl.BlockSpec((tm, f_out), lambda i, k: (i, 0)),
            scratch_shapes=[pltpu.VMEM((tm, acc_cols), jnp.float32)],
        ),
        compiler_params=pltpu.CompilerParams(
            # Row tiles independent (megacore / v7x 2-TC sharding); the
            # adjacency-column axis is the reduction and stays last.
            dimension_semantics=("parallel", "arbitrary"),
            vmem_limit_bytes=vmem_limit,
        ),
    )(*args)


class GNNEncoderPallas:
    """JAX/Pallas port of GNNEncoder(hidden_channels, out_channels)."""

    def __init__(self, in_channels, hidden_channels, out_channels, key):
        k = jax.random.split(key, 4)

        def glorot(rng, fan_in, fan_out):
            lim = (6.0 / (fan_in + fan_out)) ** 0.5
            return jax.random.uniform(rng, (fan_in, fan_out), jnp.float32,
                                      -lim, lim)

        self.in_channels = in_channels
        self.hidden_channels = hidden_channels
        self.out_channels = out_channels

        # Pad every feature dim to a multiple of 128: lane-dense outputs and
        # full MXU column occupancy.
        fin_p = _round_up(in_channels, 128)
        hid_p = _round_up(hidden_channels, 128)
        out_p = _round_up(out_channels, 128)
        self.fin_p, self.hid_p, self.out_p = fin_p, hid_p, out_p

        # Weights in bf16 -> every MXU dot is bf16 x bf16 (full rate on all
        # generations, half the weight HBM/VMEM traffic).  Bias stays f32.
        self.w1_l = _pad2(glorot(k[0], in_channels, hidden_channels),
                          fin_p, hid_p).astype(jnp.bfloat16)
        self.w1_r = _pad2(glorot(k[1], in_channels, hidden_channels),
                          fin_p, hid_p).astype(jnp.bfloat16)
        self.b1 = jnp.zeros((1, hid_p), jnp.float32)
        self.w2_l = _pad2(glorot(k[2], hidden_channels, out_channels),
                          hid_p, out_p).astype(jnp.bfloat16)
        self.w2_r = _pad2(glorot(k[3], hidden_channels, out_channels),
                          hid_p, out_p).astype(jnp.bfloat16)
        self.b2 = jnp.zeros((1, out_p), jnp.float32)

    def _layer(self, a_pad, inv_deg, x_pad, w_l, w_r, b, *, apply_relu, tm, tk,
               out_dtype):
        f_in = x_pad.shape[1]
        f_out = w_l.shape[1]
        if f_out < f_in:
            # Hoist Z = X @ W_l out of the (i, k) grid: computed exactly once,
            # and the aggregation streams the narrower Z instead of X.
            z = project(x_pad, w_l, tm=tm)
            return sage_conv(a_pad, z, x_pad, None, w_r, b, inv_deg,
                             neighbors_projected=True, apply_relu=apply_relu,
                             tm=tm, tk=tk, out_dtype=out_dtype)
        return sage_conv(a_pad, x_pad, x_pad, w_l, w_r, b, inv_deg,
                         neighbors_projected=False, apply_relu=apply_relu,
                         tm=tm, tk=tk, out_dtype=out_dtype)

    def __call__(self, x, edge_index):
        n = x.shape[0]
        tile = _pick_tile(n, max(self.fin_p, self.hid_p, self.out_p))
        n_pad = _round_up(n, tile)
        tm = tk = tile

        # Dense mean-aggregation operator built ONCE (bf16 raw counts + f32
        # 1/deg column) and streamed by both layers.
        # TODO(synk): cache (a_pad, inv_deg) when edge_index is static across
        # forward calls.
        a_pad, inv_deg = build_count_adjacency(edge_index, n_pad)
        x_pad = _pad2(x, n_pad, self.fin_p).astype(jnp.bfloat16)

        # Layer 1: relu, emit bf16 so layer 2's MXU input needs no extra cast.
        h = self._layer(a_pad, inv_deg, x_pad, self.w1_l, self.w1_r, self.b1,
                        apply_relu=True, tm=tm, tk=tk, out_dtype=jnp.bfloat16)
        # Layer 2: no relu, f32 output.
        out = self._layer(a_pad, inv_deg, h, self.w2_l, self.w2_r, self.b2,
                          apply_relu=False, tm=tm, tk=tk, out_dtype=jnp.float32)
        return out[:n, :self.out_channels]


def reference_forward(x, edge_index, model):
    """Pure-JAX f32 reference (same bf16-rounded weights, f32 math)."""
    src, dst = edge_index[0], edge_index[1]
    n = x.shape[0]

    def sage(h, w_l, w_r, b):
        agg = jnp.zeros((n, h.shape[1]), jnp.float32).at[dst].add(h[src])
        deg = jnp.zeros((n,), jnp.float32).at[dst].add(1.0)
        agg = agg / jnp.maximum(deg, 1.0)[:, None]
        return agg @ w_l + h @ w_r + b

    ic, hc, oc = model.in_channels, model.hidden_channels, model.out_channels
    w1l = model.w1_l[:ic, :hc].astype(jnp.float32)
    w1r = model.w1_r[:ic, :hc].astype(jnp.float32)
    w2l = model.w2_l[:hc, :oc].astype(jnp.float32)
    w2r = model.w2_r[:hc, :oc].astype(jnp.float32)
    h = jax.nn.relu(sage(x, w1l, w1r, model.b1[:, :hc]))
    return sage(h, w2l, w2r, model.b2[:, :oc])


if __name__ == "__main__":
    key = jax.random.PRNGKey(0)
    k_x, k_e, k_p = jax.random.split(key, 3)

    num_nodes = 20
    in_channels = 144      # pads to 256 -> exercises the hoisted-Z (proj-first) path
    hidden_channels = 32   # pads to 128
    out_channels = 16      # pads to 128 -> layer 2 exercises the agg-first path
    num_edges = 60

    x = jax.random.normal(k_x, (num_nodes, in_channels), jnp.float32)
    edge_index = jax.random.randint(k_e, (2, num_edges), 0, num_nodes, jnp.int32)

    model = GNNEncoderPallas(in_channels, hidden_channels, out_channels, k_p)
    out = model(x, edge_index)
    jax.block_until_ready(out)

    assert out.shape == (num_nodes, out_channels)
    assert bool(jnp.all(jnp.isfinite(out)))

    ref = reference_forward(x, edge_index, model)
    max_err = float(jnp.max(jnp.abs(out - ref)))
    tol = 2e-2 * float(jnp.max(jnp.abs(ref))) + 2e-2   # bf16 streams vs f32 ref
    assert max_err < tol, f"max_err={max_err} tol={tol}"

    print("KERNEL_OK")
</pallas_src>

<mosaic_0001>
module attributes {stable_mosaic.version = 11 : i64} {
  func.func @_project_kernel(%arg0: i32, %arg1: memref<128x256xbf16, #tpu.memory_space<vmem>>, %arg2: memref<256x128xbf16, #tpu.memory_space<vmem>>, %arg3: memref<128x128xbf16, #tpu.memory_space<vmem>>) attributes {dimension_semantics = [#tpu.dimension_semantics<parallel>], iteration_bounds = array<i64: 1>, scalar_prefetch = 0 : i64, scratch_operands = 0 : i64, tpu.core_type = #tpu.core_type<tc>, window_params = [{transform_indices = @transform_0, window_bounds = array<i64: 128, 256>}, {pipeline_mode = #tpu.pipeline_mode<synchronous>, transform_indices = @transform_1, window_bounds = array<i64: 256, 128>}, {transform_indices = @transform_2, window_bounds = array<i64: 128, 128>}]} {
    %c0 = arith.constant 0 : index
    %c0_0 = arith.constant 0 : index
    %0 = vector.load %arg1[%c0, %c0_0] : memref<128x256xbf16, #tpu.memory_space<vmem>>, vector<128x256xbf16>
    %c0_1 = arith.constant 0 : index
    %c0_2 = arith.constant 0 : index
    %1 = vector.load %arg2[%c0_1, %c0_2] : memref<256x128xbf16, #tpu.memory_space<vmem>>, vector<256x128xbf16>
    %cst = arith.constant dense<0.000000e+00> : vector<128x128xf32>
    %2 = tpu.matmul %0, %1, %cst {dimension_numbers = #tpu.dot_dimension_numbers<[1], [0], [0], [1], [0, 0, 1, 1], [], []>} : vector<128x256xbf16>, vector<256x128xbf16>, vector<128x128xf32> -> vector<128x128xf32>
    %3 = arith.truncf %2 : vector<128x128xf32> to vector<128x128xbf16>
    %c0_3 = arith.constant 0 : index
    %c0_4 = arith.constant 0 : index
    %4 = vector.load %arg3[%c0_3, %c0_4] : memref<128x128xbf16, #tpu.memory_space<vmem>>, vector<128x128xbf16>
    tpu.vector_store %arg3[%c0_3, %c0_4], %3 {strides = array<i32>} : memref<128x128xbf16, #tpu.memory_space<vmem>>, vector<128x128xbf16>,
    return
  }
  func.func @transform_0(%arg0: i32) -> (i32, i32) {
    %c0_i32 = arith.constant 0 : i32
    %c0_i32_0 = arith.constant 0 : i32
    return %arg0, %c0_i32 : i32, i32
  }
  func.func @transform_1(%arg0: i32) -> (i32, i32) {
    %c0_i32 = arith.constant 0 : i32
    %c0_i32_0 = arith.constant 0 : i32
    %c0_i32_1 = arith.constant 0 : i32
    return %c0_i32, %c0_i32_0 : i32, i32
  }
  func.func @transform_2(%arg0: i32) -> (i32, i32) {
    %c0_i32 = arith.constant 0 : i32
    %c0_i32_0 = arith.constant 0 : i32
    return %arg0, %c0_i32 : i32, i32
  }
}

</mosaic_0001>

<llo_original>
// kernel: tpu_custom_call.1
$region0: #{tpu_custom_call.1}
  #allocation0 [shape = 'u32[]', space=smem, size = 0x4, offset = 0x4, fixed_abs, tag = 'smem constant byte address 0x4 - core index']
  #allocation1 [shape = 'u32[144,128]{1,0:T(1,128)}', space=vmem, size = 0x12000, scoped, tag = 'internal scratch']
  %s0 = inlined_call_operand.hbm [shape: bf16[128,256], index: 0, kind: input, shape index: {}]
  %s1 = inlined_call_operand.hbm [shape: bf16[256,128], index: 1, kind: input, shape index: {}]
  %s2 = inlined_call_operand.hbm [shape: bf16[128,128], index: 2, kind: output, shape index: {}]
  %s3 = sld [smem:[#allocation0]]
  $region26: #{tpu_custom_call.1} parent=0
    _
  %s5 = ssub.s32 1, %s3
  %s6 = scalar_select 0, %s5, %s3
  $region1: #{tpu_custom_call.1} parent=0
    #allocation2 [shape = 'u8[65536]{0}', space=vmem, size = 0x10000, scoped, tag = 'input window, operand 0, single buffered']
    #allocation3 [shape = 's32[1]{0}', space=sflag, size = 0x4, scoped, tag = 'scoped memory for tpu_custom_call.1']
    #allocation4 [shape = 's32[1]{0}', space=sflag, size = 0x4, scoped, tag = 'scoped memory for tpu_custom_call.1']
    #allocation5 [shape = 'u8[65536]{0}', space=vmem, size = 0x10000, scoped, tag = 'input window, operand 1, single buffered']
    #allocation6 [shape = 's32[1]{0}', space=sflag, size = 0x4, scoped, tag = 'scoped memory for tpu_custom_call.1']
    #allocation7 [shape = 'u8[32768]{0}', space=vmem, size = 0x8000, scoped, tag = 'output window, operand 0, single buffered']
    %7 = vsyncpa [#allocation3], 0
    %8 = vsyncpa [#allocation6], 0
    %9 = vsyncpa [#allocation4], 0
    // Predicated region
    $region2: #{tpu_custom_call.1} parent=1 // pred_check
      _
    $region3: #{tpu_custom_call.1} parent=1 // pred_check_branch
      %11 = sbr.rel (0) target = $region5
    $region4: #{tpu_custom_call.1} parent=1 // pred_region
      %s13 = ssub.s32 2048, 2048
      %14 = vsyncadd [#allocation3], %s13
      %s15 = sshll.u32 [#allocation2], 4
      %s16 = int_to_ptr.vmem [resolvable:$true] %s15
      %21 = dma.hbm_to_vmem [thread:$0]  %s0, 2048, %s16, [#allocation3], 128, 128, 8
    $region5: #{tpu_custom_call.1} parent=1 // pred_fallthru
      _
    // Predicated region
    $region6: #{tpu_custom_call.1} parent=1 // pred_check
      _
    $region7: #{tpu_custom_call.1} parent=1 // pred_check_branch
      %23 = sbr.rel (0) target = $region9
    $region8: #{tpu_custom_call.1} parent=1 // pred_region
      %s25 = ssub.s32 2048, 2048
      %26 = vsyncadd [#allocation6], %s25
      %s27 = sshll.u32 [#allocation5], 4
      %s28 = int_to_ptr.vmem [resolvable:$true] %s27
      %33 = dma.hbm_to_vmem [thread:$0]  %s1, 2048, %s28, [#allocation6], 64, 64, 4
    $region9: #{tpu_custom_call.1} parent=1 // pred_fallthru
      _
    // Predicated region
    $region10: #{tpu_custom_call.1} parent=1 // pred_check
      _
    $region11: #{tpu_custom_call.1} parent=1 // pred_check_branch
      %35 = sbr.rel (0) target = $region13
    $region12: #{tpu_custom_call.1} parent=1 // pred_region
      %36 = dma.done [#allocation3], 2048
    $region13: #{tpu_custom_call.1} parent=1 // pred_fallthru
      _
    // Predicated region
    $region14: #{tpu_custom_call.1} parent=1 // pred_check
      _
    $region15: #{tpu_custom_call.1} parent=1 // pred_check_branch
      %38 = sbr.rel (0) target = $region17
    $region16: #{tpu_custom_call.1} parent=1 // pred_region
      %39 = dma.done [#allocation6], 2048
    $region17: #{tpu_custom_call.1} parent=1 // pred_fallthru
      _
    %v41 = vld [vmem:[#allocation2] sm:$0xff]
    %v42 = vld [vmem:[#allocation2 + $0x8] sm:$0xff]
    %v43 = vld [vmem:[#allocation2 + $0x10] sm:$0xff]
    %v44 = vld [vmem:[#allocation2 + $0x18] sm:$0xff]
    %v45 = vld [vmem:[#allocation2 + $0x20] sm:$0xff]
    %v46 = vld [vmem:[#allocation2 + $0x28] sm:$0xff]
    %v47 = vld [vmem:[#allocation2 + $0x30] sm:$0xff]
    %v48 = vld [vmem:[#allocation2 + $0x38] sm:$0xff]
    %v49 = vld [vmem:[#allocation2 + $0x40] sm:$0xff]
    %v50 = vld [vmem:[#allocation2 + $0x48] sm:$0xff]
    %v51 = vld [vmem:[#allocation2 + $0x50] sm:$0xff]
    %v52 = vld [vmem:[#allocation2 + $0x58] sm:$0xff]
    %v53 = vld [vmem:[#allocation2 + $0x60] sm:$0xff]
    %v54 = vld [vmem:[#allocation2 + $0x68] sm:$0xff]
    %v55 = vld [vmem:[#allocation2 + $0x70] sm:$0xff]
    %v56 = vld [vmem:[#allocation2 + $0x78] sm:$0xff]
    %v57 = vld [vmem:[#allocation5] sm:$0xf]
    %v58 = vld [vmem:[#allocation5 + $0x4] sm:$0xf]
    %v59 = vld [vmem:[#allocation5 + $0x8] sm:$0xf]
    %v60 = vld [vmem:[#allocation5 + $0xc] sm:$0xf]
    %v61 = vld [vmem:[#allocation5 + $0x10] sm:$0xf]
    %v62 = vld [vmem:[#allocation5 + $0x14] sm:$0xf]
    %v63 = vld [vmem:[#allocation5 + $0x18] sm:$0xf]
    %v64 = vld [vmem:[#allocation5 + $0x1c] sm:$0xf]
    %v65 = vld [vmem:[#allocation5 + $0x20] sm:$0xf]
    %v66 = vld [vmem:[#allocation5 + $0x24] sm:$0xf]
    %v67 = vld [vmem:[#allocation5 + $0x28] sm:$0xf]
    %v68 = vld [vmem:[#allocation5 + $0x2c] sm:$0xf]
    %v69 = vld [vmem:[#allocation5 + $0x30] sm:$0xf]
    %v70 = vld [vmem:[#allocation5 + $0x34] sm:$0xf]
    %v71 = vld [vmem:[#allocation5 + $0x38] sm:$0xf]
    %v72 = vld [vmem:[#allocation5 + $0x3c] sm:$0xf]
    %v73 = vld [vmem:[#allocation5 + $0x40] sm:$0xf]
    %v74 = vld [vmem:[#allocation5 + $0x44] sm:$0xf]
    %v75 = vld [vmem:[#allocation5 + $0x48] sm:$0xf]
    %v76 = vld [vmem:[#allocation5 + $0x4c] sm:$0xf]
    %v77 = vld [vmem:[#allocation5 + $0x50] sm:$0xf]
    %v78 = vld [vmem:[#allocation5 + $0x54] sm:$0xf]
    %v79 = vld [vmem:[#allocation5 + $0x58] sm:$0xf]
    %v80 = vld [vmem:[#allocation5 + $0x5c] sm:$0xf]
    %v81 = vld [vmem:[#allocation5 + $0x60] sm:$0xf]
    %v82 = vld [vmem:[#allocation5 + $0x64] sm:$0xf]
    %v83 = vld [vmem:[#allocation5 + $0x68] sm:$0xf]
    %v84 = vld [vmem:[#allocation5 + $0x6c] sm:$0xf]
    %v85 = vld [vmem:[#allocation5 + $0x70] sm:$0xf]
    %v86 = vld [vmem:[#allocation5 + $0x74] sm:$0xf]
    %v87 = vld [vmem:[#allocation5 + $0x78] sm:$0xf]
    %v88 = vld [vmem:[#allocation5 + $0x7c] sm:$0xf]
    %v105 = vunpack.c.l.b16 %v41
    %v106 = vunpack.c.h.b16 %v41
    %v107 = vunpack.c.l.b16 %v42
    %v108 = vunpack.c.h.b16 %v42
    %v109 = vunpack.c.l.b16 %v43
    %v110 = vunpack.c.h.b16 %v43
    %v111 = vunpack.c.l.b16 %v44
    %v112 = vunpack.c.h.b16 %v44
    %v113 = vunpack.c.l.b16 %v45
    %v114 = vunpack.c.h.b16 %v45
    %v115 = vunpack.c.l.b16 %v46
    %v116 = vunpack.c.h.b16 %v46
    %v117 = vunpack.c.l.b16 %v47
    %v118 = vunpack.c.h.b16 %v47
    %v119 = vunpack.c.l.b16 %v48
    %v120 = vunpack.c.h.b16 %v48
    %v121 = vunpack.c.l.b16 %v49
    %v122 = vunpack.c.h.b16 %v49
    %v123 = vunpack.c.l.b16 %v50
    %v124 = vunpack.c.h.b16 %v50
    %v125 = vunpack.c.l.b16 %v51
    %v126 = vunpack.c.h.b16 %v51
    %v127 = vunpack.c.l.b16 %v52
    %v128 = vunpack.c.h.b16 %v52
    %v129 = vunpack.c.l.b16 %v53
    %v130 = vunpack.c.h.b16 %v53
    %v131 = vunpack.c.l.b16 %v54
    %v132 = vunpack.c.h.b16 %v54
    %v133 = vunpack.c.l.b16 %v55
    %v134 = vunpack.c.h.b16 %v55
    %v135 = vunpack.c.l.b16 %v56
    %v136 = vunpack.c.h.b16 %v56
    %v137 = vpack.c.b16 %v107, %v105
    %v138 = vpack.c.b16 %v108, %v106
    %v139 = vpack.c.b16 %v111, %v109
    %v140 = vpack.c.b16 %v112, %v110
    %v141 = vpack.c.b16 %v115, %v113
    %v142 = vpack.c.b16 %v116, %v114
    %v143 = vpack.c.b16 %v119, %v117
    %v144 = vpack.c.b16 %v120, %v118
    %v145 = vpack.c.b16 %v123, %v121
    %v146 = vpack.c.b16 %v124, %v122
    %v147 = vpack.c.b16 %v127, %v125
    %v148 = vpack.c.b16 %v128, %v126
    %v149 = vpack.c.b16 %v131, %v129
    %v150 = vpack.c.b16 %v132, %v130
    %v151 = vpack.c.b16 %v135, %v133
    %v152 = vpack.c.b16 %v136, %v134
    %v201 = vunpack.c.l.b16 %v57
    %v202 = vunpack.c.l.b16 %v58
    %v203 = vunpack.c.l.b16 %v59
    %v204 = vunpack.c.l.b16 %v60
    %v205 = vunpack.c.l.b16 %v61
    %v206 = vunpack.c.l.b16 %v62
    %v207 = vunpack.c.l.b16 %v63
    %v208 = vunpack.c.l.b16 %v64
    %v209 = vunpack.c.l.b16 %v65
    %v210 = vunpack.c.l.b16 %v66
    %v211 = vunpack.c.l.b16 %v67
    %v212 = vunpack.c.l.b16 %v68
    %v213 = vunpack.c.l.b16 %v69
    %v214 = vunpack.c.l.b16 %v70
    %v215 = vunpack.c.l.b16 %v71
    %v216 = vunpack.c.l.b16 %v72
    %v217 = vunpack.c.l.b16 %v73
    %v218 = vunpack.c.l.b16 %v74
    %v219 = vunpack.c.l.b16 %v75
    %v220 = vunpack.c.l.b16 %v76
    %v221 = vunpack.c.l.b16 %v77
    %v222 = vunpack.c.l.b16 %v78
    %v223 = vunpack.c.l.b16 %v79
    %v224 = vunpack.c.l.b16 %v80
    %v225 = vunpack.c.l.b16 %v81
    %v226 = vunpack.c.l.b16 %v82
    %v227 = vunpack.c.l.b16 %v83
    %v228 = vunpack.c.l.b16 %v84
    %v229 = vunpack.c.l.b16 %v85
    %v230 = vunpack.c.l.b16 %v86
    %v231 = vunpack.c.l.b16 %v87
    %v232 = vunpack.c.l.b16 %v88
    %v233 = vpack.c.b16 %v202, %v201
    %v234 = vpack.c.b16 %v204, %v203
    %v235 = vpack.c.b16 %v206, %v205
    %v236 = vpack.c.b16 %v208, %v207
    %v237 = vpack.c.b16 %v210, %v209
    %v238 = vpack.c.b16 %v212, %v211
    %v239 = vpack.c.b16 %v214, %v213
    %v240 = vpack.c.b16 %v216, %v215
    %v241 = vpack.c.b16 %v218, %v217
    %v242 = vpack.c.b16 %v220, %v219
    %v243 = vpack.c.b16 %v222, %v221
    %v244 = vpack.c.b16 %v224, %v223
    %v245 = vpack.c.b16 %v226, %v225
    %v246 = vpack.c.b16 %v228, %v227
    %v247 = vpack.c.b16 %v230, %v229
    %v248 = vpack.c.b16 %v232, %v231
    %265 = vmatprep.subr.bf16.mxu0 0
    %266 = vmatpush1.bf16.msra.mxu0 %v240
    %267 = vmatprep.subr.bf16.mxu0 0
    %268 = vmatpush1.bf16.msra.mxu0 %v239
    %269 = vmatprep.subr.bf16.mxu0 0
    %270 = vmatpush1.bf16.msra.mxu0 %v238
    %271 = vmatprep.subr.bf16.mxu0 0
    %272 = vmatpush1.bf16.msra.mxu0 %v237
    %273 = vmatprep.subr.bf16.mxu0 0
    %274 = vmatpush1.bf16.msra.mxu0 %v236
    %275 = vmatprep.subr.bf16.mxu0 0
    %276 = vmatpush1.bf16.msra.mxu0 %v235
    %277 = vmatprep.subr.bf16.mxu0 0
    %278 = vmatpush1.bf16.msra.mxu0 %v234
    %279 = vmatprep.subr.bf16.mxu0 0
    %280 = vmatpush1.bf16.msra.mxu0 %v233
    %281 = vmatprep.subr.bf16.mxu0 0
    %282 = vmatpush2.bf16.msra.mxu0 %v248
    %283 = vmatprep.subr.bf16.mxu0 0
    %284 = vmatpush2.bf16.msra.mxu0 %v247
    %285 = vmatprep.subr.bf16.mxu0 0
    %286 = vmatpush2.bf16.msra.mxu0 %v246
    %287 = vmatprep.subr.bf16.mxu0 0
    %288 = vmatpush2.bf16.msra.mxu0 %v245
    %289 = vmatprep.subr.bf16.mxu0 0
    %290 = vmatpush2.bf16.msra.mxu0 %v244
    %291 = vmatprep.subr.bf16.mxu0 0
    %292 = vmatpush2.bf16.msra.mxu0 %v243
    %293 = vmatprep.subr.bf16.mxu0 0
    %294 = vmatpush2.bf16.msra.mxu0 %v242
    %295 = vmatprep.subr.bf16.mxu0 0
    %296 = vmatpush2.bf16.msra.mxu0 %v241
    %297 = vmatprep.mubr.bf16.mxu0 %v138
    %298 = vmatmul.mubr.bf16.gmra.mxu0 %v137
    %v299 = vpop.f32.mrf.mxu0
    %v300 = vadd.f32 0.0, %v299
    %v301 = vpop.f32.mrf.mxu0
    %v302 = vpop.f32.mrf.mxu0
    %v303 = vadd.f32 0.0, %v302
    %v304 = vpop.f32.mrf.mxu0
    %305 = vmatprep.mubr.bf16.mxu0 %v140
    %306 = vmatmul.mubr.bf16.gmra.mxu0 %v139
    %v307 = vpop.f32.mrf.mxu0
    %v308 = vadd.f32 0.0, %v307
    %v309 = vpop.f32.mrf.mxu0
    %v310 = vpop.f32.mrf.mxu0
    %v311 = vadd.f32 0.0, %v310
    %v312 = vpop.f32.mrf.mxu0
    %313 = vmatprep.mubr.bf16.mxu0 %v142
    %314 = vmatmul.mubr.bf16.gmra.mxu0 %v141
    %v315 = vpop.f32.mrf.mxu0
    %v316 = vadd.f32 0.0, %v315
    %v317 = vpop.f32.mrf.mxu0
    %v318 = vpop.f32.mrf.mxu0
    %v319 = vadd.f32 0.0, %v318
    %v320 = vpop.f32.mrf.mxu0
    %321 = vmatprep.mubr.bf16.mxu0 %v144
    %322 = vmatmul.mubr.bf16.gmra.mxu0 %v143
    %v323 = vpop.f32.mrf.mxu0
    %v324 = vadd.f32 0.0, %v323
    %v325 = vpop.f32.mrf.mxu0
    %v326 = vpop.f32.mrf.mxu0
    %v327 = vadd.f32 0.0, %v326
    %v328 = vpop.f32.mrf.mxu0
    %329 = vmatprep.mubr.bf16.mxu0 %v146
    %330 = vmatmul.mubr.bf16.gmra.mxu0 %v145
    %v331 = vpop.f32.mrf.mxu0
    %v332 = vadd.f32 0.0, %v331
    %v333 = vpop.f32.mrf.mxu0
    %v334 = vpop.f32.mrf.mxu0
    %v335 = vadd.f32 0.0, %v334
    %v336 = vpop.f32.mrf.mxu0
    %337 = vmatprep.mubr.bf16.mxu0 %v148
    %338 = vmatmul.mubr.bf16.gmra.mxu0 %v147
    %v339 = vpop.f32.mrf.mxu0
    %v340 = vadd.f32 0.0, %v339
    %v341 = vpop.f32.mrf.mxu0
    %v342 = vpop.f32.mrf.mxu0
    %v343 = vadd.f32 0.0, %v342
    %v344 = vpop.f32.mrf.mxu0
    %345 = vmatprep.mubr.bf16.mxu0 %v150
    %346 = vmatmul.mubr.bf16.gmra.mxu0 %v149
    %v347 = vpop.f32.mrf.mxu0
    %v348 = vadd.f32 0.0, %v347
    %v349 = vpop.f32.mrf.mxu0
    %v350 = vpop.f32.mrf.mxu0
    %v351 = vadd.f32 0.0, %v350
    %v352 = vpop.f32.mrf.mxu0
    %353 = vmatprep.mubr.bf16.mxu0 %v152
    %354 = vmatmul.mubr.bf16.gmra.mxu0 %v151
    %v355 = vpop.f32.mrf.mxu0
    %v356 = vadd.f32 0.0, %v355
    %v357 = vpop.f32.mrf.mxu0
    %v358 = vpop.f32.mrf.mxu0
    %v359 = vadd.f32 0.0, %v358
    %v360 = vpop.f32.mrf.mxu0
    %361 = vdwg.mxu0
    %v362 = vpack.c.bf16 %v303, %v300
    %v363 = vpack.c.bf16 %v311, %v308
    %v364 = vpack.c.bf16 %v319, %v316
    %v365 = vpack.c.bf16 %v327, %v324
    %v366 = vpack.c.bf16 %v335, %v332
    %v367 = vpack.c.bf16 %v343, %v340
    %v368 = vpack.c.bf16 %v351, %v348
    %v369 = vpack.c.bf16 %v359, %v356
    %v378 = vunpack.c.l.b16 %v362
    %v379 = vunpack.c.h.b16 %v362
    %v380 = vunpack.c.l.b16 %v363
    %v381 = vunpack.c.h.b16 %v363
    %v382 = vunpack.c.l.b16 %v364
    %v383 = vunpack.c.h.b16 %v364
    %v384 = vunpack.c.l.b16 %v365
    %v385 = vunpack.c.h.b16 %v365
    %v386 = vunpack.c.l.b16 %v366
    %v387 = vunpack.c.h.b16 %v366
    %v388 = vunpack.c.l.b16 %v367
    %v389 = vunpack.c.h.b16 %v367
    %v390 = vunpack.c.l.b16 %v368
    %v391 = vunpack.c.h.b16 %v368
    %v392 = vunpack.c.l.b16 %v369
    %v393 = vunpack.c.h.b16 %v369
    %v394 = vpack.c.b16 %v378, %v378
    %v395 = vpack.c.b16 %v379, %v379
    %v396 = vpack.c.b16 %v380, %v380
    %v397 = vpack.c.b16 %v381, %v381
    %v398 = vpack.c.b16 %v382, %v382
    %v399 = vpack.c.b16 %v383, %v383
    %v400 = vpack.c.b16 %v384, %v384
    %v401 = vpack.c.b16 %v385, %v385
    %v402 = vpack.c.b16 %v386, %v386
    %v403 = vpack.c.b16 %v387, %v387
    %v404 = vpack.c.b16 %v388, %v388
    %v405 = vpack.c.b16 %v389, %v389
    %v406 = vpack.c.b16 %v390, %v390
    %v407 = vpack.c.b16 %v391, %v391
    %v408 = vpack.c.b16 %v392, %v392
    %v409 = vpack.c.b16 %v393, %v393
    %426 = vst [vmem:[#allocation7] sm:$0xf] %v394
    %427 = vst [vmem:[#allocation7 + $0x4] sm:$0xf] %v395
    %428 = vst [vmem:[#allocation7 + $0x8] sm:$0xf] %v396
    %429 = vst [vmem:[#allocation7 + $0xc] sm:$0xf] %v397
    %430 = vst [vmem:[#allocation7 + $0x10] sm:$0xf] %v398
    %431 = vst [vmem:[#allocation7 + $0x14] sm:$0xf] %v399
    %432 = vst [vmem:[#allocation7 + $0x18] sm:$0xf] %v400
    %433 = vst [vmem:[#allocation7 + $0x1c] sm:$0xf] %v401
    %434 = vst [vmem:[#allocation7 + $0x20] sm:$0xf] %v402
    %435 = vst [vmem:[#allocation7 + $0x24] sm:$0xf] %v403
    %436 = vst [vmem:[#allocation7 + $0x28] sm:$0xf] %v404
    %437 = vst [vmem:[#allocation7 + $0x2c] sm:$0xf] %v405
    %438 = vst [vmem:[#allocation7 + $0x30] sm:$0xf] %v406
    %439 = vst [vmem:[#allocation7 + $0x34] sm:$0xf] %v407
    %440 = vst [vmem:[#allocation7 + $0x38] sm:$0xf] %v408
    %441 = vst [vmem:[#allocation7 + $0x3c] sm:$0xf] %v409
    // Predicated region
    $region18: #{tpu_custom_call.1} parent=1 // pred_check
      _
    $region19: #{tpu_custom_call.1} parent=1 // pred_check_branch
      %443 = sbr.rel (0) target = $region21
    $region20: #{tpu_custom_call.1} parent=1 // pred_region
      %s445 = ssub.s32 1024, 1024
      %446 = vsyncadd [#allocation4], %s445
      %s447 = sshll.u32 [#allocation7], 4
      %s448 = int_to_ptr.vmem [resolvable:$true] %s447
      %453 = dma.vmem_to_hbm [thread:$0]  %s448, 1024, %s2, [#allocation4], 64, 64, 4
    $region21: #{tpu_custom_call.1} parent=1 // pred_fallthru
      _
    // Predicated region
    $region22: #{tpu_custom_call.1} parent=1 // pred_check
      _
    $region23: #{tpu_custom_call.1} parent=1 // pred_check_branch
      %455 = sbr.rel (0) target = $region25
    $region24: #{tpu_custom_call.1} parent=1 // pred_region
      %456 = dma.done [#allocation4], 1024
    $region25: #{tpu_custom_call.1} parent=1 // pred_fallthru
      _
    %457 = vsyncpa [#allocation3], 1
    %458 = vsyncpa [#allocation6], 1
    %459 = vsyncpa [#allocation4], 1

</llo_original>
